<compile_context>
chip_gen: v7x
topology: tpu7x:2x2x1
jax: 0.10.0
libtpu: 0.0.40
codegen_flags: <defaults>
</compile_context>

<pallas_src>
import functools

import numpy as np
import jax
import jax.numpy as jnp
from jax.experimental import pallas as pl
from jax.experimental.pallas import tpu as pltpu

EPS = 1e-5
LANE = 128


# ----------------------------- in-kernel helpers -----------------------------

def _shift_down(h):
    """prev[j] = h[j-1], prev[0] = 0 (zero 'SAME' pad applied post-activation)."""
    rolled = pltpu.roll(h, shift=1, axis=0)               # XLU sublane rotate
    ridx = jax.lax.broadcasted_iota(jnp.int32, h.shape, 0)
    return jnp.where(ridx == 0, 0.0, rolled)


def _shift_up(h):
    """next[j] = h[j+1], next[last] = 0."""
    rows = h.shape[0]
    rolled = pltpu.roll(h, shift=rows - 1, axis=0)         # == roll by -1
    ridx = jax.lax.broadcasted_iota(jnp.int32, h.shape, 0)
    return jnp.where(ridx == rows - 1, 0.0, rolled)


# --------------------------------- kernels -----------------------------------

def stage1_kernel(xe_ref, xo_ref, sc1_ref, sh1_ref, w1_ref, b1_ref,
                  y1_ref, ysum_ref, ysq_ref, *, odd_tail):
    """BN1+ReLU -> Conv1d(k=3, s=2, p=1) with fused BN2 partial statistics.

    xe_ref/xo_ref : (1, L1, CinP)    even / odd raw input rows (channels-last)
    sc1/sh1       : (1, CinP)        folded BN1 scale/shift (f32)
    w1_ref        : (3, CinP, CoutP) tap-major conv1 weight (bf16)
    y1_ref        : (1, L1, CoutP)   bf16 intermediate
    ysum/ysq      : (1, 1, CoutP)    per-block sum(y1) / sum(y1^2) (f32)
    """
    sc1 = sc1_ref[...]
    sh1 = sh1_ref[...]
    he = jnp.maximum(xe_ref[0] * sc1 + sh1, 0.0)           # rows 2j
    ho = jnp.maximum(xo_ref[0] * sc1 + sh1, 0.0)           # rows 2j+1
    if odd_tail:
        # Odd L: the last odd row is synthetic; the conv's zero pad is applied
        # AFTER BN+ReLU, so force the activation to exactly zero there.
        ridx = jax.lax.broadcasted_iota(jnp.int32, ho.shape, 0)
        ho = jnp.where(ridx == ho.shape[0] - 1, 0.0, ho)
    hm = _shift_down(ho)                                   # rows 2j-1 (zero at j=0)

    # 3 accumulating tap matmuls against static weight slices (no im2col concat)
    acc = jnp.dot(hm.astype(jnp.bfloat16), w1_ref[0],
                  preferred_element_type=jnp.float32)
    acc += jnp.dot(he.astype(jnp.bfloat16), w1_ref[1],
                   preferred_element_type=jnp.float32)
    acc += jnp.dot(ho.astype(jnp.bfloat16), w1_ref[2],
                   preferred_element_type=jnp.float32)
    y1 = acc + b1_ref[...]

    y1_ref[0] = y1.astype(y1_ref.dtype)                    # bf16 intermediate
    # fused BN2 batch-statistics partials (tiny outputs; avoids y1 re-read)
    ysum_ref[0] = jnp.sum(y1, axis=0, keepdims=True)
    ysq_ref[0] = jnp.sum(y1 * y1, axis=0, keepdims=True)


def stage2_kernel(y1_ref, xe_ref, sc2_ref, sh2_ref, w2_ref, b2_ref,
                  wr_ref, br_ref, out_ref):
    """BN2+ReLU -> Conv1d(k=3, s=1, p=1), plus fused residual Conv1d(k=1, s=2)."""
    h2 = jnp.maximum(y1_ref[0].astype(jnp.float32) * sc2_ref[...] + sh2_ref[...],
                     0.0)                                  # (L1, CoutP) f32
    prev = _shift_down(h2)
    nxt = _shift_up(h2)

    acc = jnp.dot(prev.astype(jnp.bfloat16), w2_ref[0],
                  preferred_element_type=jnp.float32)
    acc += jnp.dot(h2.astype(jnp.bfloat16), w2_ref[1],
                   preferred_element_type=jnp.float32)
    acc += jnp.dot(nxt.astype(jnp.bfloat16), w2_ref[2],
                   preferred_element_type=jnp.float32)
    acc += b2_ref[...]

    # residual 1x1 stride-2 conv on raw even input rows (no HBM round trip)
    acc += jnp.dot(xe_ref[0].astype(jnp.bfloat16), wr_ref[...],
                   preferred_element_type=jnp.float32) + br_ref[...]
    out_ref[0] = acc


# --------------------------------- wrapper ------------------------------------

def _round_up(v, m):
    return ((v + m - 1) // m) * m


def _pad2d(a, rows, cols):
    return jnp.pad(a, ((0, rows - a.shape[0]), (0, cols - a.shape[1])))


def _pad_last(a, cols):
    pad = [(0, 0)] * (a.ndim - 1) + [(0, cols - a.shape[-1])]
    return jnp.pad(a, pad)


def _vmem_limit_bytes():
    """Generation-aware scoped-VMEM limit (v7x: 64 MiB physical, v5e/v6e: 128)."""
    default = 32 * 1024 * 1024
    try:
        info = pltpu.get_tpu_info()
        cap = getattr(info, "vmem_capacity_bytes", None)
        if not cap:
            return default
        return max(default, min(int(cap) * 3 // 4, 96 * 1024 * 1024))
    except Exception:
        return default


def down_conv(x, params):
    """x: (N, Cin, L) float32, NCL like PyTorch. Returns (N, Cout, ceil(L/2))."""
    g1, be1, w1, b1, g2, be2, w2, b2, wr, br = params
    N, Cin, L = x.shape
    Cout = w1.shape[0]
    L1 = (L + 1) // 2
    odd_tail = (L % 2 == 1)
    CinP = _round_up(Cin, LANE)
    CoutP = _round_up(Cout, LANE)

    # ---- BN1 batch statistics (training mode, biased var): tiny reductions,
    #      folded into per-channel scale/shift so the conv pass stays tileable.
    m1 = jnp.mean(x, axis=(0, 2))
    v1 = jnp.var(x, axis=(0, 2))
    sc1 = g1 * jax.lax.rsqrt(v1 + EPS)
    sh1 = be1 - m1 * sc1

    # ---- layout plumbing: channels-last, lane-padded, even/odd row split ----
    xcl = _pad_last(jnp.transpose(x, (0, 2, 1)), CinP)     # (N, L, CinP)
    x_even = xcl[:, 0::2, :]                               # (N, L1, CinP)
    x_odd = xcl[:, 1::2, :]                                # (N, L - L1, CinP)
    if odd_tail:
        x_odd = jnp.pad(x_odd, ((0, 0), (0, 1), (0, 0)))   # masked inside kernel

    # ---- weights: tap-major, lane-padded, bf16 MXU operands ----
    w1t = jnp.transpose(w1, (2, 1, 0))                     # (3, Cin, Cout)
    W1 = jnp.stack([_pad2d(w1t[k], CinP, CoutP) for k in range(3)]
                   ).astype(jnp.bfloat16)                  # (3, CinP, CoutP)
    w2t = jnp.transpose(w2, (2, 1, 0))                     # (3, Cout, Cout)
    W2 = jnp.stack([_pad2d(w2t[k], CoutP, CoutP) for k in range(3)]
                   ).astype(jnp.bfloat16)                  # (3, CoutP, CoutP)
    Wr = _pad2d(jnp.transpose(wr[:, :, 0]), CinP, CoutP).astype(jnp.bfloat16)

    sc1p = _pad_last(sc1.reshape(1, Cin), CinP)
    sh1p = _pad_last(sh1.reshape(1, Cin), CinP)
    b1p = _pad_last(b1.reshape(1, Cout), CoutP)
    b2p = _pad_last(b2.reshape(1, Cout), CoutP)
    brp = _pad_last(br.reshape(1, Cout), CoutP)

    cparams = pltpu.CompilerParams(dimension_semantics=("parallel",),
                                   vmem_limit_bytes=_vmem_limit_bytes())

    # ---- stage 1: BN1+ReLU+Conv1(s=2) + fused BN2 partial stats, grid over N ----
    y1, ysum, ysq = pl.pallas_call(
        functools.partial(stage1_kernel, odd_tail=odd_tail),
        out_shape=(jax.ShapeDtypeStruct((N, L1, CoutP), jnp.bfloat16),
                   jax.ShapeDtypeStruct((N, 1, CoutP), jnp.float32),
                   jax.ShapeDtypeStruct((N, 1, CoutP), jnp.float32)),
        grid=(N,),
        in_specs=[
            pl.BlockSpec((1, L1, CinP), lambda n: (n, 0, 0)),        # x_even
            pl.BlockSpec((1, L1, CinP), lambda n: (n, 0, 0)),        # x_odd
            pl.BlockSpec((1, CinP), lambda n: (0, 0)),               # BN1 scale
            pl.BlockSpec((1, CinP), lambda n: (0, 0)),               # BN1 shift
            pl.BlockSpec((3, CinP, CoutP), lambda n: (0, 0, 0)),     # W1 taps
            pl.BlockSpec((1, CoutP), lambda n: (0, 0)),              # conv1 bias
        ],
        out_specs=(pl.BlockSpec((1, L1, CoutP), lambda n: (n, 0, 0)),
                   pl.BlockSpec((1, 1, CoutP), lambda n: (n, 0, 0)),
                   pl.BlockSpec((1, 1, CoutP), lambda n: (n, 0, 0))),
        compiler_params=cparams,
    )(x_even, x_odd, sc1p, sh1p, W1, b1p)

    # ---- finalize BN2 (training-mode, biased var) from tiny fused partials ----
    cnt = N * L1
    m2 = jnp.sum(ysum[:, 0, :Cout], axis=0) / cnt
    ex2 = jnp.sum(ysq[:, 0, :Cout], axis=0) / cnt
    v2 = jnp.maximum(ex2 - m2 * m2, 0.0)
    sc2 = g2 * jax.lax.rsqrt(v2 + EPS)
    sh2 = be2 - m2 * sc2
    sc2p = _pad_last(sc2.reshape(1, Cout), CoutP)
    sh2p = _pad_last(sh2.reshape(1, Cout), CoutP)

    # ---- stage 2: BN2+ReLU+Conv2(s=1) + fused residual conv, grid over N ----
    out = pl.pallas_call(
        stage2_kernel,
        out_shape=jax.ShapeDtypeStruct((N, L1, CoutP), jnp.float32),
        grid=(N,),
        in_specs=[
            pl.BlockSpec((1, L1, CoutP), lambda n: (n, 0, 0)),       # y1 (bf16)
            pl.BlockSpec((1, L1, CinP), lambda n: (n, 0, 0)),        # x_even
            pl.BlockSpec((1, CoutP), lambda n: (0, 0)),              # BN2 scale
            pl.BlockSpec((1, CoutP), lambda n: (0, 0)),              # BN2 shift
            pl.BlockSpec((3, CoutP, CoutP), lambda n: (0, 0, 0)),    # W2 taps
            pl.BlockSpec((1, CoutP), lambda n: (0, 0)),              # conv2 bias
            pl.BlockSpec((CinP, CoutP), lambda n: (0, 0)),           # residual W
            pl.BlockSpec((1, CoutP), lambda n: (0, 0)),              # residual b
        ],
        out_specs=pl.BlockSpec((1, L1, CoutP), lambda n: (n, 0, 0)),
        compiler_params=cparams,
    )(y1, x_even, sc2p, sh2p, W2, b2p, Wr, brp)

    # back to PyTorch NCL, dropping lane padding
    return jnp.transpose(out[:, :, :Cout], (0, 2, 1))


# --------------------------------- reference ----------------------------------

def down_conv_ref(x, params):
    """Pure-JAX reference mirroring the PyTorch forward (training-mode BN)."""
    g1, be1, w1, b1, g2, be2, w2, b2, wr, br = params
    dn = ('NCH', 'OIH', 'NCH')

    def bn_relu(t, g, be):
        m = jnp.mean(t, axis=(0, 2), keepdims=True)
        v = jnp.mean((t - m) ** 2, axis=(0, 2), keepdims=True)
        return jnp.maximum((t - m) / jnp.sqrt(v + EPS) * g[None, :, None]
                           + be[None, :, None], 0.0)

    h = bn_relu(x, g1, be1)
    y = jax.lax.conv_general_dilated(h, w1, (2,), [(1, 1)],
                                     dimension_numbers=dn) + b1[None, :, None]
    h2 = bn_relu(y, g2, be2)
    y2 = jax.lax.conv_general_dilated(h2, w2, (1,), [(1, 1)],
                                      dimension_numbers=dn) + b2[None, :, None]
    s = jax.lax.conv_general_dilated(x, wr, (2,), [(0, 0)],
                                     dimension_numbers=dn) + br[None, :, None]
    return y2 + s


# ------------------------------------ main -------------------------------------

if __name__ == "__main__":
    N, Cin, Cout = 2, 4, 8

    key = jax.random.PRNGKey(0)
    ks = jax.random.split(key, 12)
    params = (
        1.0 + 0.1 * jax.random.normal(ks[0], (Cin,), jnp.float32),    # BN1 gamma
        0.1 * jax.random.normal(ks[1], (Cin,), jnp.float32),          # BN1 beta
        0.2 * jax.random.normal(ks[2], (Cout, Cin, 3), jnp.float32),  # conv1 w
        0.1 * jax.random.normal(ks[3], (Cout,), jnp.float32),         # conv1 b
        1.0 + 0.1 * jax.random.normal(ks[4], (Cout,), jnp.float32),   # BN2 gamma
        0.1 * jax.random.normal(ks[5], (Cout,), jnp.float32),         # BN2 beta
        0.2 * jax.random.normal(ks[6], (Cout, Cout, 3), jnp.float32), # conv2 w
        0.1 * jax.random.normal(ks[7], (Cout,), jnp.float32),         # conv2 b
        0.2 * jax.random.normal(ks[8], (Cout, Cin, 1), jnp.float32),  # residual w
        0.1 * jax.random.normal(ks[9], (Cout,), jnp.float32),         # residual b
    )

    # even-L and odd-L sequence lengths (PyTorch output length = ceil(L/2))
    for xkey, L in ((ks[10], 16), (ks[11], 15)):
        x = jax.random.normal(xkey, (N, Cin, L), jnp.float32)
        out = jax.block_until_ready(down_conv(x, params))
        ref = jax.block_until_ready(down_conv_ref(x, params))
        assert out.shape == (N, Cout, (L + 1) // 2), out.shape
        # tolerance reflects bf16 MXU operands / bf16 y1 intermediate
        np.testing.assert_allclose(np.asarray(out), np.asarray(ref),
                                   rtol=5e-2, atol=5e-2)

    print("KERNEL_OK")
</pallas_src>

<mosaic_0001>
module attributes {stable_mosaic.version = 11 : i64} {
  func.func @stage1_kernel(%arg0: i32, %arg1: memref<1x8x128xf32, #tpu.memory_space<vmem>>, %arg2: memref<1x8x128xf32, #tpu.memory_space<vmem>>, %arg3: memref<1x128xf32, #tpu.memory_space<vmem>>, %arg4: memref<1x128xf32, #tpu.memory_space<vmem>>, %arg5: memref<3x128x128xbf16, #tpu.memory_space<vmem>>, %arg6: memref<1x128xf32, #tpu.memory_space<vmem>>, %arg7: memref<1x8x128xbf16, #tpu.memory_space<vmem>>, %arg8: memref<1x1x128xf32, #tpu.memory_space<vmem>>, %arg9: memref<1x1x128xf32, #tpu.memory_space<vmem>>) attributes {dimension_semantics = [#tpu.dimension_semantics<parallel>], iteration_bounds = array<i64: 2>, scalar_prefetch = 0 : i64, scratch_operands = 0 : i64, tpu.core_type = #tpu.core_type<tc>, window_params = [{transform_indices = @transform_0, window_bounds = array<i64: 1, 8, 128>}, {transform_indices = @transform_1, window_bounds = array<i64: 1, 8, 128>}, {pipeline_mode = #tpu.pipeline_mode<synchronous>, transform_indices = @transform_2, window_bounds = array<i64: 1, 128>}, {pipeline_mode = #tpu.pipeline_mode<synchronous>, transform_indices = @transform_3, window_bounds = array<i64: 1, 128>}, {pipeline_mode = #tpu.pipeline_mode<synchronous>, transform_indices = @transform_4, window_bounds = array<i64: 3, 128, 128>}, {pipeline_mode = #tpu.pipeline_mode<synchronous>, transform_indices = @transform_5, window_bounds = array<i64: 1, 128>}, {transform_indices = @transform_6, window_bounds = array<i64: 1, 8, 128>}, {transform_indices = @transform_7, window_bounds = array<i64: 1, 1, 128>}, {transform_indices = @transform_8, window_bounds = array<i64: 1, 1, 128>}]} {
    %c0 = arith.constant 0 : index
    %c0_0 = arith.constant 0 : index
    %0 = vector.load %arg3[%c0, %c0_0] : memref<1x128xf32, #tpu.memory_space<vmem>>, vector<1x128xf32>
    %c0_1 = arith.constant 0 : index
    %c0_2 = arith.constant 0 : index
    %1 = vector.load %arg4[%c0_1, %c0_2] : memref<1x128xf32, #tpu.memory_space<vmem>>, vector<1x128xf32>
    %c0_3 = arith.constant 0 : index
    %c0_4 = arith.constant 0 : index
    %c0_5 = arith.constant 0 : index
    %2 = vector.load %arg1[%c0_3, %c0_4, %c0_5] : memref<1x8x128xf32, #tpu.memory_space<vmem>>, vector<1x8x128xf32>
    %3 = vector.shape_cast %2 : vector<1x8x128xf32> to vector<8x128xf32>
    %4 = vector.broadcast %0 : vector<1x128xf32> to vector<8x128xf32>
    %5 = arith.mulf %3, %4 : vector<8x128xf32>
    %6 = vector.broadcast %1 : vector<1x128xf32> to vector<8x128xf32>
    %7 = arith.addf %5, %6 : vector<8x128xf32>
    %cst = arith.constant 0.000000e+00 : f32
    %8 = vector.broadcast %cst : f32 to vector<8x128xf32>
    %9 = arith.maximumf %7, %8 : vector<8x128xf32>
    %c0_6 = arith.constant 0 : index
    %c0_7 = arith.constant 0 : index
    %c0_8 = arith.constant 0 : index
    %10 = vector.load %arg2[%c0_6, %c0_7, %c0_8] : memref<1x8x128xf32, #tpu.memory_space<vmem>>, vector<1x8x128xf32>
    %11 = vector.shape_cast %10 : vector<1x8x128xf32> to vector<8x128xf32>
    %12 = vector.broadcast %0 : vector<1x128xf32> to vector<8x128xf32>
    %13 = arith.mulf %11, %12 : vector<8x128xf32>
    %14 = vector.broadcast %1 : vector<1x128xf32> to vector<8x128xf32>
    %15 = arith.addf %13, %14 : vector<8x128xf32>
    %cst_9 = arith.constant 0.000000e+00 : f32
    %16 = vector.broadcast %cst_9 : f32 to vector<8x128xf32>
    %17 = arith.maximumf %15, %16 : vector<8x128xf32>
    %c1_i32 = arith.constant 1 : i32
    %18 = tpu.dynamic_rotate %17 by %c1_i32 dim 0 : vector<8x128xf32>, i32 -> vector<8x128xf32>
    %19 = tpu.iota {dimensions = array<i32: 0>} : vector<8x128xi32>
    %c0_i32 = arith.constant 0 : i32
    %20 = vector.broadcast %c0_i32 : i32 to vector<8x128xi32>
    %21 = arith.cmpi eq, %19, %20 : vector<8x128xi32>
    %cst_10 = arith.constant 0.000000e+00 : f32
    %22 = vector.broadcast %cst_10 : f32 to vector<8x128xf32>
    %23 = arith.select %21, %22, %18 : vector<8x128xi1>, vector<8x128xf32>
    %24 = arith.truncf %23 : vector<8x128xf32> to vector<8x128xbf16>
    %c0_11 = arith.constant 0 : index
    %c0_12 = arith.constant 0 : index
    %c0_13 = arith.constant 0 : index
    %25 = vector.load %arg5[%c0_11, %c0_12, %c0_13] : memref<3x128x128xbf16, #tpu.memory_space<vmem>>, vector<1x128x128xbf16>
    %26 = vector.shape_cast %25 : vector<1x128x128xbf16> to vector<128x128xbf16>
    %cst_14 = arith.constant dense<0.000000e+00> : vector<8x128xf32>
    %27 = tpu.matmul %24, %26, %cst_14 {dimension_numbers = #tpu.dot_dimension_numbers<[1], [0], [0], [1], [0, 0, 1, 1], [], []>} : vector<8x128xbf16>, vector<128x128xbf16>, vector<8x128xf32> -> vector<8x128xf32>
    %28 = arith.truncf %9 : vector<8x128xf32> to vector<8x128xbf16>
    %c1 = arith.constant 1 : index
    %c0_15 = arith.constant 0 : index
    %c0_16 = arith.constant 0 : index
    %29 = vector.load %arg5[%c1, %c0_15, %c0_16] : memref<3x128x128xbf16, #tpu.memory_space<vmem>>, vector<1x128x128xbf16>
    %30 = vector.shape_cast %29 : vector<1x128x128xbf16> to vector<128x128xbf16>
    %cst_17 = arith.constant dense<0.000000e+00> : vector<8x128xf32>
    %31 = tpu.matmul %28, %30, %cst_17 {dimension_numbers = #tpu.dot_dimension_numbers<[1], [0], [0], [1], [0, 0, 1, 1], [], []>} : vector<8x128xbf16>, vector<128x128xbf16>, vector<8x128xf32> -> vector<8x128xf32>
    %32 = arith.addf %27, %31 : vector<8x128xf32>
    %33 = arith.truncf %17 : vector<8x128xf32> to vector<8x128xbf16>
    %c2 = arith.constant 2 : index
    %c0_18 = arith.constant 0 : index
    %c0_19 = arith.constant 0 : index
    %34 = vector.load %arg5[%c2, %c0_18, %c0_19] : memref<3x128x128xbf16, #tpu.memory_space<vmem>>, vector<1x128x128xbf16>
    %35 = vector.shape_cast %34 : vector<1x128x128xbf16> to vector<128x128xbf16>
    %cst_20 = arith.constant dense<0.000000e+00> : vector<8x128xf32>
    %36 = tpu.matmul %33, %35, %cst_20 {dimension_numbers = #tpu.dot_dimension_numbers<[1], [0], [0], [1], [0, 0, 1, 1], [], []>} : vector<8x128xbf16>, vector<128x128xbf16>, vector<8x128xf32> -> vector<8x128xf32>
    %37 = arith.addf %32, %36 : vector<8x128xf32>
    %c0_21 = arith.constant 0 : index
    %c0_22 = arith.constant 0 : index
    %38 = vector.load %arg6[%c0_21, %c0_22] : memref<1x128xf32, #tpu.memory_space<vmem>>, vector<1x128xf32>
    %39 = vector.broadcast %38 : vector<1x128xf32> to vector<8x128xf32>
    %40 = arith.addf %37, %39 : vector<8x128xf32>
    %41 = arith.truncf %40 : vector<8x128xf32> to vector<8x128xbf16>
    %c0_23 = arith.constant 0 : index
    %c0_24 = arith.constant 0 : index
    %c0_25 = arith.constant 0 : index
    %42 = vector.load %arg7[%c0_23, %c0_24, %c0_25] : memref<1x8x128xbf16, #tpu.memory_space<vmem>>, vector<1x8x128xbf16>
    %43 = vector.shape_cast %42 : vector<1x8x128xbf16> to vector<8x128xbf16>
    %44 = vector.shape_cast %41 : vector<8x128xbf16> to vector<1x8x128xbf16>
    tpu.vector_store %arg7[%c0_23, %c0_24, %c0_25], %44 {strides = array<i32>} : memref<1x8x128xbf16, #tpu.memory_space<vmem>>, vector<1x8x128xbf16>,
    %cst_26 = arith.constant dense<0.000000e+00> : vector<128xf32>
    %45 = vector.multi_reduction <add>, %40, %cst_26 [0] : vector<8x128xf32> to vector<128xf32>
    %46 = vector.shape_cast %45 : vector<128xf32> to vector<1x128xf32>
    %c0_27 = arith.constant 0 : index
    %c0_28 = arith.constant 0 : index
    %c0_29 = arith.constant 0 : index
    %47 = vector.load %arg8[%c0_27, %c0_28, %c0_29] : memref<1x1x128xf32, #tpu.memory_space<vmem>>, vector<1x1x128xf32>
    %48 = vector.shape_cast %47 : vector<1x1x128xf32> to vector<1x128xf32>
    %49 = vector.shape_cast %46 : vector<1x128xf32> to vector<1x1x128xf32>
    tpu.vector_store %arg8[%c0_27, %c0_28, %c0_29], %49 {strides = array<i32>} : memref<1x1x128xf32, #tpu.memory_space<vmem>>, vector<1x1x128xf32>,
    %50 = arith.mulf %40, %40 : vector<8x128xf32>
    %cst_30 = arith.constant dense<0.000000e+00> : vector<128xf32>
    %51 = vector.multi_reduction <add>, %50, %cst_30 [0] : vector<8x128xf32> to vector<128xf32>
    %52 = vector.shape_cast %51 : vector<128xf32> to vector<1x128xf32>
    %c0_31 = arith.constant 0 : index
    %c0_32 = arith.constant 0 : index
    %c0_33 = arith.constant 0 : index
    %53 = vector.load %arg9[%c0_31, %c0_32, %c0_33] : memref<1x1x128xf32, #tpu.memory_space<vmem>>, vector<1x1x128xf32>
    %54 = vector.shape_cast %53 : vector<1x1x128xf32> to vector<1x128xf32>
    %55 = vector.shape_cast %52 : vector<1x128xf32> to vector<1x1x128xf32>
    tpu.vector_store %arg9[%c0_31, %c0_32, %c0_33], %55 {strides = array<i32>} : memref<1x1x128xf32, #tpu.memory_space<vmem>>, vector<1x1x128xf32>,
    return
  }
  func.func @transform_0(%arg0: i32) -> (i32, i32, i32) {
    %c0_i32 = arith.constant 0 : i32
    %c0_i32_0 = arith.constant 0 : i32
    %c0_i32_1 = arith.constant 0 : i32
    return %arg0, %c0_i32, %c0_i32_0 : i32, i32, i32
  }
  func.func @transform_1(%arg0: i32) -> (i32, i32, i32) {
    %c0_i32 = arith.constant 0 : i32
    %c0_i32_0 = arith.constant 0 : i32
    %c0_i32_1 = arith.constant 0 : i32
    return %arg0, %c0_i32, %c0_i32_0 : i32, i32, i32
  }
  func.func @transform_2(%arg0: i32) -> (i32, i32) {
    %c0_i32 = arith.constant 0 : i32
    %c0_i32_0 = arith.constant 0 : i32
    %c0_i32_1 = arith.constant 0 : i32
    return %c0_i32, %c0_i32_0 : i32, i32
  }
  func.func @transform_3(%arg0: i32) -> (i32, i32) {
    %c0_i32 = arith.constant 0 : i32
    %c0_i32_0 = arith.constant 0 : i32
    %c0_i32_1 = arith.constant 0 : i32
    return %c0_i32, %c0_i32_0 : i32, i32
  }
  func.func @transform_4(%arg0: i32) -> (i32, i32, i32) {
    %c0_i32 = arith.constant 0 : i32
    %c0_i32_0 = arith.constant 0 : i32
    %c0_i32_1 = arith.constant 0 : i32
    %c0_i32_2 = arith.constant 0 : i32
    return %c0_i32, %c0_i32_0, %c0_i32_1 : i32, i32, i32
  }
  func.func @transform_5(%arg0: i32) -> (i32, i32) {
    %c0_i32 = arith.constant 0 : i32
    %c0_i32_0 = arith.constant 0 : i32
    %c0_i32_1 = arith.constant 0 : i32
    return %c0_i32, %c0_i32_0 : i32, i32
  }
  func.func @transform_6(%arg0: i32) -> (i32, i32, i32) {
    %c0_i32 = arith.constant 0 : i32
    %c0_i32_0 = arith.constant 0 : i32
    %c0_i32_1 = arith.constant 0 : i32
    return %arg0, %c0_i32, %c0_i32_0 : i32, i32, i32
  }
  func.func @transform_7(%arg0: i32) -> (i32, i32, i32) {
    %c0_i32 = arith.constant 0 : i32
    %c0_i32_0 = arith.constant 0 : i32
    %c0_i32_1 = arith.constant 0 : i32
    return %arg0, %c0_i32, %c0_i32_0 : i32, i32, i32
  }
  func.func @transform_8(%arg0: i32) -> (i32, i32, i32) {
    %c0_i32 = arith.constant 0 : i32
    %c0_i32_0 = arith.constant 0 : i32
    %c0_i32_1 = arith.constant 0 : i32
    return %arg0, %c0_i32, %c0_i32_0 : i32, i32, i32
  }
}

</mosaic_0001>

<llo_original>
// kernel: tpu_custom_call.1
$region0: #{tpu_custom_call.1}
  #allocation0 [shape = 'u32[]', space=smem, size = 0x4, offset = 0x4, fixed_abs, tag = 'smem constant byte address 0x4 - core index']
  #allocation1 [shape = 'u32[144,128]{1,0:T(1,128)}', space=vmem, size = 0x12000, scoped, tag = 'internal scratch']
  %s0 = inlined_call_operand.hbm [shape: f32[2,8,128], index: 0, kind: input, shape index: {}]
  %s1 = inlined_call_operand.hbm [shape: f32[2,8,128], index: 1, kind: input, shape index: {}]
  %s2 = inlined_call_operand.vmem [shape: f32[1,128], index: 2, kind: input, shape index: {}]
  %s3 = inlined_call_operand.vmem [shape: f32[1,128], index: 3, kind: input, shape index: {}]
  %s4 = inlined_call_operand.hbm [shape: bf16[3,128,128], index: 4, kind: input, shape index: {}]
  %s5 = inlined_call_operand.vmem [shape: f32[1,128], index: 5, kind: input, shape index: {}]
  %s6 = inlined_call_operand.hbm [shape: bf16[2,8,128], index: 6, kind: output, shape index: {0}]
  %s7 = inlined_call_operand.hbm [shape: f32[2,1,128], index: 7, kind: output, shape index: {1}]
  %s8 = inlined_call_operand.hbm [shape: f32[2,1,128], index: 8, kind: output, shape index: {2}]
  %9 = xla_tuple %s6, %s7, %s8
  %s10 = sld [smem:[#allocation0]]
  $region85: #{tpu_custom_call.1} parent=0
    _
  %s12 = ssub.s32 1, %s10
  %s13 = scalar_select 0, %s12, %s10
  $region1: #{tpu_custom_call.1} parent=0
    #allocation2 [shape = 'u8[8192]{0}', space=vmem, size = 0x2000, scoped, tag = 'input window, operand 0']
    #allocation3 [shape = 's32[2]{0}', space=sflag, size = 0x8, scoped, tag = 'scoped memory for tpu_custom_call.1']
    #allocation4 [shape = 's32[2]{0}', space=sflag, size = 0x8, scoped, tag = 'scoped memory for tpu_custom_call.1']
    #allocation5 [shape = 'u8[8192]{0}', space=vmem, size = 0x2000, scoped, tag = 'input window, operand 1']
    #allocation6 [shape = 's32[2]{0}', space=sflag, size = 0x8, scoped, tag = 'scoped memory for tpu_custom_call.1']
    #allocation7 [shape = 'u8[98304]{0}', space=vmem, size = 0x18000, scoped, tag = 'input window, operand 4, single buffered']
    #allocation8 [shape = 'u8[4096]{0}', space=vmem, size = 0x1000, scoped, tag = 'output window, operand 0']
    #allocation9 [shape = 'u8[1024]{0}', space=vmem, size = 0x400, scoped, tag = 'output window, operand 1']
    #allocation10 [shape = 's32[2]{0}', space=sflag, size = 0x8, scoped, tag = 'scoped memory for tpu_custom_call.1']
    #allocation11 [shape = 'u8[1024]{0}', space=vmem, size = 0x400, scoped, tag = 'output window, operand 2']
    %14 = vsyncpa [#allocation3], 0
    %s15 = scalar_lea.sflag [#allocation3], 1
    %16 = vsyncpa %s15, 0
    %17 = vsyncpa [#allocation6], 0
    %s18 = scalar_lea.sflag [#allocation6], 1
    %19 = vsyncpa %s18, 0
    %20 = vsyncpa [#allocation4], 0
    %s21 = scalar_lea.sflag [#allocation4], 1
    %22 = vsyncpa %s21, 0
    %23 = vsyncpa [#allocation10], 0
    %s24 = scalar_lea.sflag [#allocation10], 1
    %25 = vsyncpa %s24, 0
    loop: start=0, step=1, limit=4
    $region2: #{tpu_custom_call.1} parent=1 // loop_pre_header
      _
    $region3: #{tpu_custom_call.1} parent=1 // loop_header
      %s27 = sphi 0, %s31
      %p28 = scmp.ge.s32.totalorder %s27, 4
      %s37 = sphi 0, %s39
      %s40 = sphi 0, %s37
      %s41 = sphi 0, %s40
      %s57 = sphi 0, %s41
      %s63 = sphi 0, %s65
      %s66 = sphi 0, %s63
      %s67 = sphi 0, %s66
      %s83 = sphi 0, %s67
      %s87 = sphi 0, %s87
      %s89 = sphi 0, %s87
      %s90 = sphi 0, %s89
      %s104 = sphi 0, %s90
      %s108 = sphi 0, %s108
      %s110 = sphi 0, %s108
      %s111 = sphi 0, %s110
      %s125 = sphi 0, %s111
      %s129 = sphi 0, %s129
      %s131 = sphi 0, %s129
      %s132 = sphi 0, %s131
      %s146 = sphi 0, %s132
      %s150 = sphi 0, %s150
      %s152 = sphi 0, %s150
      %s153 = sphi 0, %s152
      %s167 = sphi 0, %s153
      %s173 = sphi 0, %s175
      %s176 = sphi 0, %s173
      %s177 = sphi 0, %s176
      %s193 = sphi 0, %s177
      %s199 = sphi 0, %s201
      %s202 = sphi 0, %s199
      %s203 = sphi 0, %s202
      %s219 = sphi 0, %s203
      %s225 = sphi 0, %s227
      %s228 = sphi 0, %s225
      %s229 = sphi 0, %s228
      %s245 = sphi 0, %s229
    $region4: #{tpu_custom_call.1} parent=1 // loop_header_branch
      %30 = sbr.rel (%p28) target = $region8
    $region5: #{tpu_custom_call.1} parent=1 // loop_body
      %s32 = ssub.s32 %s27, 1
      %s33 = ssub.s32 %s27, 2
      %s34 = sadd.s32 %s27, 1
      %s35 = ssub.s32 %s27, %s34
      %p36 = scmp.eq.s32.totalorder %s35, 0
      %s38 = sadd.s32 %s37, 1
      %s39 = scalar_select %p36, %s37, %s38
      %p42 = pneg %p36
      %p43 = scmp.eq.s32.totalorder %s27, 1
      %p44 = por %p42, %p43
      %p45 = scmp.ne.s32.totalorder %s37, %s40
      %p46 = scmp.eq.s32.totalorder %s27, 0
      %p47 = por %p45, %p46
      %p48 = scmp.ne.s32.totalorder %s37, %s40
      %p49 = scmp.eq.s32.totalorder %s32, 1
      %p50 = por %p48, %p49
      %p51 = scmp.ne.s32.totalorder %s40, %s41
      %p52 = scmp.eq.s32.totalorder %s32, 0
      %p53 = por %p51, %p52
      %p54 = scmp.ne.s32.totalorder %s40, %s41
      %p55 = scmp.eq.s32.totalorder %s33, 1
      %p56 = por %p54, %p55
      %p58 = scmp.ne.s32.totalorder %s41, %s57
      %p59 = scmp.eq.s32.totalorder %s33, 0
      %p60 = por %p58, %p59
      %s61 = ssub.s32 %s27, %s34
      %p62 = scmp.eq.s32.totalorder %s61, 0
      %s64 = sadd.s32 %s63, 1
      %s65 = scalar_select %p62, %s63, %s64
      %p68 = pneg %p62
      %p69 = scmp.eq.s32.totalorder %s27, 1
      %p70 = por %p68, %p69
      %p71 = scmp.ne.s32.totalorder %s63, %s66
      %p72 = scmp.eq.s32.totalorder %s27, 0
      %p73 = por %p71, %p72
      %p74 = scmp.ne.s32.totalorder %s63, %s66
      %p75 = scmp.eq.s32.totalorder %s32, 1
      %p76 = por %p74, %p75
      %p77 = scmp.ne.s32.totalorder %s66, %s67
      %p78 = scmp.eq.s32.totalorder %s32, 0
      %p79 = por %p77, %p78
      %p80 = scmp.ne.s32.totalorder %s66, %s67
      %p81 = scmp.eq.s32.totalorder %s33, 1
      %p82 = por %p80, %p81
      %p84 = scmp.ne.s32.totalorder %s67, %s83
      %p85 = scmp.eq.s32.totalorder %s33, 0
      %p86 = por %p84, %p85
      %s88 = sadd.s32 %s87, 1
      %p91 = scmp.eq.s32.totalorder %s27, 1
      %p92 = scmp.ne.s32.totalorder %s87, %s89
      %p93 = scmp.eq.s32.totalorder %s27, 0
      %p94 = por %p92, %p93
      %p95 = scmp.ne.s32.totalorder %s87, %s89
      %p96 = scmp.eq.s32.totalorder %s32, 1
      %p97 = por %p95, %p96
      %p98 = scmp.ne.s32.totalorder %s89, %s90
      %p99 = scmp.eq.s32.totalorder %s32, 0
      %p100 = por %p98, %p99
      %p101 = scmp.ne.s32.totalorder %s89, %s90
      %p102 = scmp.eq.s32.totalorder %s33, 1
      %p103 = por %p101, %p102
      %p105 = scmp.ne.s32.totalorder %s90, %s104
      %p106 = scmp.eq.s32.totalorder %s33, 0
      %p107 = por %p105, %p106
      %s109 = sadd.s32 %s108, 1
      %p112 = scmp.eq.s32.totalorder %s27, 1
      %p113 = scmp.ne.s32.totalorder %s108, %s110
      %p114 = scmp.eq.s32.totalorder %s27, 0
      %p115 = por %p113, %p114
      %p116 = scmp.ne.s32.totalorder %s108, %s110
      %p117 = scmp.eq.s32.totalorder %s32, 1
      %p118 = por %p116, %p117
      %p119 = scmp.ne.s32.totalorder %s110, %s111
      %p120 = scmp.eq.s32.totalorder %s32, 0
      %p121 = por %p119, %p120
      %p122 = scmp.ne.s32.totalorder %s110, %s111
      %p123 = scmp.eq.s32.totalorder %s33, 1
      %p124 = por %p122, %p123
      %p126 = scmp.ne.s32.totalorder %s111, %s125
      %p127 = scmp.eq.s32.totalorder %s33, 0
      %p128 = por %p126, %p127
      %s130 = sadd.s32 %s129, 1
      %p133 = scmp.eq.s32.totalorder %s27, 1
      %p134 = scmp.ne.s32.totalorder %s129, %s131
      %p135 = scmp.eq.s32.totalorder %s27, 0
      %p136 = por %p134, %p135
      %p137 = scmp.ne.s32.totalorder %s129, %s131
      %p138 = scmp.eq.s32.totalorder %s32, 1
      %p139 = por %p137, %p138
      %p140 = scmp.ne.s32.totalorder %s131, %s132
      %p141 = scmp.eq.s32.totalorder %s32, 0
      %p142 = por %p140, %p141
      %p143 = scmp.ne.s32.totalorder %s131, %s132
      %p144 = scmp.eq.s32.totalorder %s33, 1
      %p145 = por %p143, %p144
      %p147 = scmp.ne.s32.totalorder %s132, %s146
      %p148 = scmp.eq.s32.totalorder %s33, 0
      %p149 = por %p147, %p148
      %s151 = sadd.s32 %s150, 1
      %p154 = scmp.eq.s32.totalorder %s27, 1
      %p155 = scmp.ne.s32.totalorder %s150, %s152
      %p156 = scmp.eq.s32.totalorder %s27, 0
      %p157 = por %p155, %p156
      %p158 = scmp.ne.s32.totalorder %s150, %s152
      %p159 = scmp.eq.s32.totalorder %s32, 1
      %p160 = por %p158, %p159
      %p161 = scmp.ne.s32.totalorder %s152, %s153
      %p162 = scmp.eq.s32.totalorder %s32, 0
      %p163 = por %p161, %p162
      %p164 = scmp.ne.s32.totalorder %s152, %s153
      %p165 = scmp.eq.s32.totalorder %s33, 1
      %p166 = por %p164, %p165
      %p168 = scmp.ne.s32.totalorder %s153, %s167
      %p169 = scmp.eq.s32.totalorder %s33, 0
      %p170 = por %p168, %p169
      %s171 = ssub.s32 %s27, %s34
      %p172 = scmp.eq.s32.totalorder %s171, 0
      %s174 = sadd.s32 %s173, 1
      %s175 = scalar_select %p172, %s173, %s174
      %p178 = pneg %p172
      %p179 = scmp.eq.s32.totalorder %s27, 1
      %p180 = por %p178, %p179
      %p181 = scmp.ne.s32.totalorder %s173, %s176
      %p182 = scmp.eq.s32.totalorder %s27, 0
      %p183 = por %p181, %p182
      %p184 = scmp.ne.s32.totalorder %s173, %s176
      %p185 = scmp.eq.s32.totalorder %s32, 1
      %p186 = por %p184, %p185
      %p187 = scmp.ne.s32.totalorder %s176, %s177
      %p188 = scmp.eq.s32.totalorder %s32, 0
      %p189 = por %p187, %p188
      %p190 = scmp.ne.s32.totalorder %s176, %s177
      %p191 = scmp.eq.s32.totalorder %s33, 1
      %p192 = por %p190, %p191
      %p194 = scmp.ne.s32.totalorder %s177, %s193
      %p195 = scmp.eq.s32.totalorder %s33, 0
      %p196 = por %p194, %p195
      %s197 = ssub.s32 %s27, %s34
      %p198 = scmp.eq.s32.totalorder %s197, 0
      %s200 = sadd.s32 %s199, 1
      %s201 = scalar_select %p198, %s199, %s200
      %p204 = pneg %p198
      %p205 = scmp.eq.s32.totalorder %s27, 1
      %p206 = por %p204, %p205
      %p207 = scmp.ne.s32.totalorder %s199, %s202
      %p208 = scmp.eq.s32.totalorder %s27, 0
      %p209 = por %p207, %p208
      %p210 = scmp.ne.s32.totalorder %s199, %s202
      %p211 = scmp.eq.s32.totalorder %s32, 1
      %p212 = por %p210, %p211
      %p213 = scmp.ne.s32.totalorder %s202, %s203
      %p214 = scmp.eq.s32.totalorder %s32, 0
      %p215 = por %p213, %p214
      %p216 = scmp.ne.s32.totalorder %s202, %s203
      %p217 = scmp.eq.s32.totalorder %s33, 1
      %p218 = por %p216, %p217
      %p220 = scmp.ne.s32.totalorder %s203, %s219
      %p221 = scmp.eq.s32.totalorder %s33, 0
      %p222 = por %p220, %p221
      %s223 = ssub.s32 %s27, %s34
      %p224 = scmp.eq.s32.totalorder %s223, 0
      %s226 = sadd.s32 %s225, 1
      %s227 = scalar_select %p224, %s225, %s226
      %p230 = pneg %p224
      %p231 = scmp.eq.s32.totalorder %s27, 1
      %p232 = por %p230, %p231
      %p233 = scmp.ne.s32.totalorder %s225, %s228
      %p234 = scmp.eq.s32.totalorder %s27, 0
      %p235 = por %p233, %p234
      %p236 = scmp.ne.s32.totalorder %s225, %s228
      %p237 = scmp.eq.s32.totalorder %s32, 1
      %p238 = por %p236, %p237
      %p239 = scmp.ne.s32.totalorder %s228, %s229
      %p240 = scmp.eq.s32.totalorder %s32, 0
      %p241 = por %p239, %p240
      %p242 = scmp.ne.s32.totalorder %s228, %s229
      %p243 = scmp.eq.s32.totalorder %s33, 1
      %p244 = por %p242, %p243
      %p246 = scmp.ne.s32.totalorder %s229, %s245
      %p247 = scmp.eq.s32.totalorder %s33, 0
      %p248 = por %p246, %p247
      %p249 = scmp.le.s32.totalorder 1, %s27
      %p250 = scmp.lt.s32.totalorder %s27, 3
      %p251 = pnand %p249, %p250
      %p252 = pneg %p251
      // Predicated region
      $region9: #{tpu_custom_call.1} parent=5 // pred_check
        _
      $region10: #{tpu_custom_call.1} parent=5 // pred_check_branch
        %254 = sbr.rel (%p251) target = $region12
      $region11: #{tpu_custom_call.1} parent=5 // pred_region
        %s255 = ssub.s32 %s27, 1
        // Predicated region
        $region13: #{tpu_custom_call.1} parent=11 // pred_check
          %p256 = pneg %p100
        $region14: #{tpu_custom_call.1} parent=11 // pred_check_branch
          %258 = sbr.rel (%p256) target = $region16
        $region15: #{tpu_custom_call.1} parent=11 // pred_region
          _
        $region16: #{tpu_custom_call.1} parent=11 // pred_fallthru
          _
        // Predicated region
        $region17: #{tpu_custom_call.1} parent=11 // pred_check
          %p259 = pneg %p121
        $region18: #{tpu_custom_call.1} parent=11 // pred_check_branch
          %261 = sbr.rel (%p259) target = $region20
        $region19: #{tpu_custom_call.1} parent=11 // pred_region
          _
        $region20: #{tpu_custom_call.1} parent=11 // pred_fallthru
          _
        // Predicated region
        $region21: #{tpu_custom_call.1} parent=11 // pred_check
          %p262 = pneg %p142
        $region22: #{tpu_custom_call.1} parent=11 // pred_check_branch
          %264 = sbr.rel (%p262) target = $region24
        $region23: #{tpu_custom_call.1} parent=11 // pred_region
          %s266 = ssub.s32 3072, 3072
          %267 = vsyncadd [#allocation6], %s266
          %s268 = sshll.u32 [#allocation7], 4
          %s269 = int_to_ptr.vmem [resolvable:$true] %s268
          %274 = dma.hbm_to_vmem [thread:$0]  %s4, 3072, %s269, [#allocation6], 64, 64, 4
        $region24: #{tpu_custom_call.1} parent=11 // pred_fallthru
          _
        // Predicated region
        $region25: #{tpu_custom_call.1} parent=11 // pred_check
          %p275 = pneg %p163
        $region26: #{tpu_custom_call.1} parent=11 // pred_check_branch
          %277 = sbr.rel (%p275) target = $region28
        $region27: #{tpu_custom_call.1} parent=11 // pred_region
          _
        $region28: #{tpu_custom_call.1} parent=11 // pred_fallthru
          _
      $region12: #{tpu_custom_call.1} parent=5 // pred_fallthru
        _
      %p278 = scmp.lt.s32.totalorder %s27, 2
      // Predicated region
      $region29: #{tpu_custom_call.1} parent=5 // pred_check
        %p279 = pneg %p278
      $region30: #{tpu_custom_call.1} parent=5 // pred_check_branch
        %281 = sbr.rel (%p279) target = $region32
      $region31: #{tpu_custom_call.1} parent=5 // pred_region
        // Predicated region
        $region33: #{tpu_custom_call.1} parent=31 // pred_check
          %p282 = pneg %p47
        $region34: #{tpu_custom_call.1} parent=31 // pred_check_branch
          %284 = sbr.rel (%p282) target = $region36
        $region35: #{tpu_custom_call.1} parent=31 // pred_region
          %s285 = sand.u32 %s37, 1
          %s286 = scalar_lea.sflag [#allocation3], %s285
          %s287 = sand.u32 %s37, 1
          %s288 = smul.addr %s287, 8
          %s289 = scalar_lea.vmem [#allocation2], %s288
          %s291 = ssub.s32 128, 128
          %292 = vsyncadd %s286, %s291
          %s293 = smul.addr %s27, 128
          %s294 = scalar_lea.hbm %s0, %s293
          %s296 = sshll.u32 %s289, 4
          %s297 = int_to_ptr.vmem [resolvable:$true] %s296
          %299 = dma.hbm_to_vmem [thread:$0]  %s294, 128, %s297, %s286
        $region36: #{tpu_custom_call.1} parent=31 // pred_fallthru
          _
        // Predicated region
        $region37: #{tpu_custom_call.1} parent=31 // pred_check
          %p300 = pneg %p73
        $region38: #{tpu_custom_call.1} parent=31 // pred_check_branch
          %302 = sbr.rel (%p300) target = $region40
        $region39: #{tpu_custom_call.1} parent=31 // pred_region
          %s303 = sand.u32 %s27, 1
          %s304 = scalar_lea.sflag [#allocation6], %s303
          %s305 = sand.u32 %s63, 1
          %s306 = smul.addr %s305, 8
          %s307 = scalar_lea.vmem [#allocation5], %s306
          %s309 = ssub.s32 128, 128
          %310 = vsyncadd %s304, %s309
          %s311 = smul.addr %s27, 128
          %s312 = scalar_lea.hbm %s1, %s311
          %s314 = sshll.u32 %s307, 4
          %s315 = int_to_ptr.vmem [resolvable:$true] %s314
          %317 = dma.hbm_to_vmem [thread:$0]  %s312, 128, %s315, %s304
        $region40: #{tpu_custom_call.1} parent=31 // pred_fallthru
          _
      $region32: #{tpu_custom_call.1} parent=5 // pred_fallthru
        _
      %p318 = scmp.le.s32.totalorder 1, %s27
      %p319 = scmp.lt.s32.totalorder %s27, 3
      %p320 = pnand %p318, %p319
      %p321 = pneg %p320
      // Predicated region
      $region41: #{tpu_custom_call.1} parent=5 // pred_check
        _
      $region42: #{tpu_custom_call.1} parent=5 // pred_check_branch
        %323 = sbr.rel (%p320) target = $region44
      $region43: #{tpu_custom_call.1} parent=5 // pred_region
        %s324 = ssub.s32 %s27, 1
        %s325 = sand.u32 %s40, 1
        %s326 = scalar_lea.sflag [#allocation3], %s325
        %s327 = sand.u32 %s40, 1
        %s328 = smul.addr %s327, 8
        %s329 = scalar_lea.vmem [#allocation2], %s328
        // Predicated region
        $region45: #{tpu_custom_call.1} parent=43 // pred_check
          %p330 = pneg %p53
        $region46: #{tpu_custom_call.1} parent=43 // pred_check_branch
          %332 = sbr.rel (%p330) target = $region48
        $region47: #{tpu_custom_call.1} parent=43 // pred_region
          %333 = dma.done %s326, 128
        $region48: #{tpu_custom_call.1} parent=43 // pred_fallthru
          _
        %s334 = sand.u32 %s32, 1
        %s335 = scalar_lea.sflag [#allocation6], %s334
        %s336 = sand.u32 %s66, 1
        %s337 = smul.addr %s336, 8
        %s338 = scalar_lea.vmem [#allocation5], %s337
        // Predicated region
        $region49: #{tpu_custom_call.1} parent=43 // pred_check
          %p339 = pneg %p79
        $region50: #{tpu_custom_call.1} parent=43 // pred_check_branch
          %341 = sbr.rel (%p339) target = $region52
        $region51: #{tpu_custom_call.1} parent=43 // pred_region
          %342 = dma.done %s335, 128
        $region52: #{tpu_custom_call.1} parent=43 // pred_fallthru
          _
        // Predicated region
        $region53: #{tpu_custom_call.1} parent=43 // pred_check
          %p343 = pneg %p142
        $region54: #{tpu_custom_call.1} parent=43 // pred_check_branch
          %345 = sbr.rel (%p343) target = $region56
        $region55: #{tpu_custom_call.1} parent=43 // pred_region
          %346 = dma.done [#allocation6], 3072
        $region56: #{tpu_custom_call.1} parent=43 // pred_fallthru
          _
        %s347 = sand.u32 %s40, 1
        %s348 = scalar_lea.sflag [#allocation3], %s347
        %s349 = sand.u32 %s40, 1
        %s350 = smul.addr %s349, 8
        %s351 = scalar_lea.vmem [#allocation2], %s350
        %p352 = pneg %p53
        %p353 = pneg %p50
        %s354 = sand.u32 %s32, 1
        %s355 = scalar_lea.sflag [#allocation6], %s354
        %s356 = sand.u32 %s66, 1
        %s357 = smul.addr %s356, 8
        %s358 = scalar_lea.vmem [#allocation5], %s357
        %p359 = pneg %p79
        %p360 = pneg %p76
        %p361 = pneg %p100
        %p362 = pneg %p97
        %p363 = pneg %p121
        %p364 = pneg %p118
        %p365 = pneg %p142
        %p366 = pneg %p139
        %p367 = pneg %p163
        %p368 = pneg %p160
        %p369 = pneg %p189
        %p370 = pneg %p186
        %s371 = sand.u32 %s176, 1
        %s372 = scalar_lea.sflag [#allocation4], %s371
        %s373 = sand.u32 %s176, 1
        %s374 = smul.addr %s373, 4
        %s375 = scalar_lea.vmem [#allocation8], %s374
        %p376 = pneg %p215
        %p377 = pneg %p212
        %s378 = sand.u32 %s32, 1
        %s379 = scalar_lea.sflag [#allocation10], %s378
        %s380 = sand.u32 %s202, 1
        %s381 = scalar_lea.vmem [#allocation9], %s380
        %p382 = pneg %p241
        %p383 = pneg %p238
        %s384 = sand.u32 %s32, 1
        %s385 = scalar_lea.sflag [#allocation10], %s384
        %s386 = sand.u32 %s228, 1
        %s387 = scalar_lea.vmem [#allocation11], %s386
        %v389 = vld [vmem:[%s2] sm:$0x1]
        %v390 = vld [vmem:[%s3] sm:$0x1]
        %v391 = vld [vmem:[%s329] sm:$0xff]
        %v393 = vlaneseq
        %v394 = vshrl.u32 %v393, 7
        %v395 = vsub.s32 0, %v394
        %v396 = vrot.slane %v389, %v395
        %v398 = vmul.f32 %v391, %v396
        %v400 = vlaneseq
        %v401 = vshrl.u32 %v400, 7
        %v402 = vsub.s32 0, %v401
        %v403 = vrot.slane %v390, %v402
        %v405 = vadd.f32 %v398, %v403
        %v406 = vmax.f32 %v405, 0.0
        %v407 = vld [vmem:[%s338] sm:$0xff]
        %v408 = vmul.f32 %v407, %v396
        %v409 = vadd.f32 %v408, %v403
        %v410 = vmax.f32 %v409, 0.0
        %v411 = vrot.slane %v410, 7
        %v412 = vlaneseq
        %v413 = vshrl.u32 %v412, 7
        %vm414 = vcmp.eq.s32.totalorder %v413, 0
        %v415 = vsel %vm414, 0.0, %v411
        %v416 = vpack.c.bf16 %v415, %v415
        %v417 = vld [vmem:[#allocation7] sm:$0xf]
        %v418 = vld [vmem:[#allocation7 + $0x4] sm:$0xf]
        %v419 = vld [vmem:[#allocation7 + $0x8] sm:$0xf]
        %v420 = vld [vmem:[#allocation7 + $0xc] sm:$0xf]
        %v421 = vld [vmem:[#allocation7 + $0x10] sm:$0xf]
        %v422 = vld [vmem:[#allocation7 + $0x14] sm:$0xf]
        %v423 = vld [vmem:[#allocation7 + $0x18] sm:$0xf]
        %v424 = vld [vmem:[#allocation7 + $0x1c] sm:$0xf]
        %v425 = vld [vmem:[#allocation7 + $0x20] sm:$0xf]
        %v426 = vld [vmem:[#allocation7 + $0x24] sm:$0xf]
        %v427 = vld [vmem:[#allocation7 + $0x28] sm:$0xf]
        %v428 = vld [vmem:[#allocation7 + $0x2c] sm:$0xf]
        %v429 = vld [vmem:[#allocation7 + $0x30] sm:$0xf]
        %v430 = vld [vmem:[#allocation7 + $0x34] sm:$0xf]
        %v431 = vld [vmem:[#allocation7 + $0x38] sm:$0xf]
        %v432 = vld [vmem:[#allocation7 + $0x3c] sm:$0xf]
        %v433 = vpack.c.bf16 %v406, %v406
        %s434 = scalar_lea.vmem [#allocation7], 64
        %v435 = vld [vmem:[%s434] sm:$0xf]
        %v436 = vld [vmem:[%s434 + $0x4] sm:$0xf]
        %v437 = vld [vmem:[%s434 + $0x8] sm:$0xf]
        %v438 = vld [vmem:[%s434 + $0xc] sm:$0xf]
        %v439 = vld [vmem:[%s434 + $0x10] sm:$0xf]
        %v440 = vld [vmem:[%s434 + $0x14] sm:$0xf]
        %v441 = vld [vmem:[%s434 + $0x18] sm:$0xf]
        %v442 = vld [vmem:[%s434 + $0x1c] sm:$0xf]
        %v443 = vld [vmem:[%s434 + $0x20] sm:$0xf]
        %v444 = vld [vmem:[%s434 + $0x24] sm:$0xf]
        %v445 = vld [vmem:[%s434 + $0x28] sm:$0xf]
        %v446 = vld [vmem:[%s434 + $0x2c] sm:$0xf]
        %v447 = vld [vmem:[%s434 + $0x30] sm:$0xf]
        %v448 = vld [vmem:[%s434 + $0x34] sm:$0xf]
        %v449 = vld [vmem:[%s434 + $0x38] sm:$0xf]
        %v450 = vld [vmem:[%s434 + $0x3c] sm:$0xf]
        %v467 = vunpack.c.l.b16 %v435
        %v468 = vunpack.c.l.b16 %v436
        %v469 = vunpack.c.l.b16 %v437
        %v470 = vunpack.c.l.b16 %v438
        %v471 = vunpack.c.l.b16 %v439
        %v472 = vunpack.c.l.b16 %v440
        %v473 = vunpack.c.l.b16 %v441
        %v474 = vunpack.c.l.b16 %v442
        %v475 = vunpack.c.l.b16 %v443
        %v476 = vunpack.c.l.b16 %v444
        %v477 = vunpack.c.l.b16 %v445
        %v478 = vunpack.c.l.b16 %v446
        %v479 = vunpack.c.l.b16 %v447
        %v480 = vunpack.c.l.b16 %v448
        %v481 = vunpack.c.l.b16 %v449
        %v482 = vunpack.c.l.b16 %v450
        %v483 = vpack.c.b16 %v468, %v467
        %v484 = vpack.c.b16 %v470, %v469
        %v485 = vpack.c.b16 %v472, %v471
        %v486 = vpack.c.b16 %v474, %v473
        %v487 = vpack.c.b16 %v476, %v475
        %v488 = vpack.c.b16 %v478, %v477
        %v489 = vpack.c.b16 %v480, %v479
        %v490 = vpack.c.b16 %v482, %v481
        %499 = vmatprep.subr.bf16.mxu0 0
        %500 = vmatpush1.bf16.msra.mxu0 %v483
        %501 = vmatprep.subr.bf16.mxu0 0
        %502 = vmatpush1.bf16.msra.mxu0 %v484
        %503 = vmatprep.subr.bf16.mxu0 0
        %504 = vmatpush1.bf16.msra.mxu0 %v485
        %505 = vmatprep.subr.bf16.mxu0 0
        %506 = vmatpush1.bf16.msra.mxu0 %v486
        %507 = vmatprep.subr.bf16.mxu0 0
        %508 = vmatpush1.bf16.msra.mxu0 %v487
        %509 = vmatprep.subr.bf16.mxu0 0
        %510 = vmatpush1.bf16.msra.mxu0 %v488
        %511 = vmatprep.subr.bf16.mxu0 0
        %512 = vmatpush1.bf16.msra.mxu0 %v489
        %513 = vmatprep.subr.bf16.mxu0 0
        %514 = vmatpush1.bf16.msra.mxu0 %v490
        %515 = vmatprep.subr.bf16.mxu0 0
        %516 = vmatpush1.bf16.msra.mxu0 0
        %517 = vmatprep.subr.bf16.mxu0 0
        %518 = vmatpush1.bf16.msra.mxu0 0
        %519 = vmatprep.subr.bf16.mxu0 0
        %520 = vmatpush1.bf16.msra.mxu0 0
        %521 = vmatprep.subr.bf16.mxu0 0
        %522 = vmatpush1.bf16.msra.mxu0 0
        %523 = vmatprep.subr.bf16.mxu0 0
        %524 = vmatpush1.bf16.msra.mxu0 0
        %525 = vmatprep.subr.bf16.mxu0 0
        %526 = vmatpush1.bf16.msra.mxu0 0
        %527 = vmatprep.subr.bf16.mxu0 0
        %528 = vmatpush1.bf16.msra.mxu0 0
        %529 = vmatprep.subr.bf16.mxu0 0
        %530 = vmatpush1.bf16.msra.mxu0 0
        %531 = vmatprep.mubr.bf16.mxu0 0
        %532 = vmatmul.mubr.bf16.gmra.mrb[0].mxu0 %v433
        %v533 = vpop.f32.mrb[0].mxu0
        %v534 = vadd.f32 0.0, %v533
        %v535 = vpop.f32.mrb[0].mxu0
        %v536 = vpop.f32.mrb[0].mxu0
        %v537 = vpop.f32.mrb[0].mxu0
        %538 = vdwg.mxu0
        %v555 = vunpack.c.l.b16 %v417
        %v556 = vunpack.c.l.b16 %v418
        %v557 = vunpack.c.l.b16 %v419
        %v558 = vunpack.c.l.b16 %v420
        %v559 = vunpack.c.l.b16 %v421
        %v560 = vunpack.c.l.b16 %v422
        %v561 = vunpack.c.l.b16 %v423
        %v562 = vunpack.c.l.b16 %v424
        %v563 = vunpack.c.l.b16 %v425
        %v564 = vunpack.c.l.b16 %v426
        %v565 = vunpack.c.l.b16 %v427
        %v566 = vunpack.c.l.b16 %v428
        %v567 = vunpack.c.l.b16 %v429
        %v568 = vunpack.c.l.b16 %v430
        %v569 = vunpack.c.l.b16 %v431
        %v570 = vunpack.c.l.b16 %v432
        %v571 = vpack.c.b16 %v556, %v555
        %v572 = vpack.c.b16 %v558, %v557
        %v573 = vpack.c.b16 %v560, %v559
        %v574 = vpack.c.b16 %v562, %v561
        %v575 = vpack.c.b16 %v564, %v563
        %v576 = vpack.c.b16 %v566, %v565
        %v577 = vpack.c.b16 %v568, %v567
        %v578 = vpack.c.b16 %v570, %v569
        %587 = vmatprep.subr.bf16.mxu0 0
        %588 = vmatpush1.bf16.msra.mxu0 %v571
        %589 = vmatprep.subr.bf16.mxu0 0
        %590 = vmatpush1.bf16.msra.mxu0 %v572
        %591 = vmatprep.subr.bf16.mxu0 0
        %592 = vmatpush1.bf16.msra.mxu0 %v573
        %593 = vmatprep.subr.bf16.mxu0 0
        %594 = vmatpush1.bf16.msra.mxu0 %v574
        %595 = vmatprep.subr.bf16.mxu0 0
        %596 = vmatpush1.bf16.msra.mxu0 %v575
        %597 = vmatprep.subr.bf16.mxu0 0
        %598 = vmatpush1.bf16.msra.mxu0 %v576
        %599 = vmatprep.subr.bf16.mxu0 0
        %600 = vmatpush1.bf16.msra.mxu0 %v577
        %601 = vmatprep.subr.bf16.mxu0 0
        %602 = vmatpush1.bf16.msra.mxu0 %v578
        %603 = vmatprep.subr.bf16.mxu0 0
        %604 = vmatpush1.bf16.msra.mxu0 0
        %605 = vmatprep.subr.bf16.mxu0 0
        %606 = vmatpush1.bf16.msra.mxu0 0
        %607 = vmatprep.subr.bf16.mxu0 0
        %608 = vmatpush1.bf16.msra.mxu0 0
        %609 = vmatprep.subr.bf16.mxu0 0
        %610 = vmatpush1.bf16.msra.mxu0 0
        %611 = vmatprep.subr.bf16.mxu0 0
        %612 = vmatpush1.bf16.msra.mxu0 0
        %613 = vmatprep.subr.bf16.mxu0 0
        %614 = vmatpush1.bf16.msra.mxu0 0
        %615 = vmatprep.subr.bf16.mxu0 0
        %616 = vmatpush1.bf16.msra.mxu0 0
        %617 = vmatprep.subr.bf16.mxu0 0
        %618 = vmatpush1.bf16.msra.mxu0 0
        %619 = vmatprep.mubr.bf16.mxu0 0
        %620 = vmatmul.mubr.bf16.gmra.mrb[0].mxu0 %v416
        %v621 = vpop.f32.mrb[0].mxu0
        %v622 = vadd.f32 %v534, %v621
        %v623 = vpop.f32.mrb[0].mxu0
        %v624 = vpop.f32.mrb[0].mxu0
        %v625 = vpop.f32.mrb[0].mxu0
        %626 = vdwg.mxu0
        %v627 = vpack.c.bf16 %v410, %v410
        %s628 = scalar_lea.vmem [#allocation7], 128
        %v629 = vld [vmem:[%s628] sm:$0xf]
        %v630 = vld [vmem:[%s628 + $0x4] sm:$0xf]
        %v631 = vld [vmem:[%s628 + $0x8] sm:$0xf]
        %v632 = vld [vmem:[%s628 + $0xc] sm:$0xf]
        %v633 = vld [vmem:[%s628 + $0x10] sm:$0xf]
        %v634 = vld [vmem:[%s628 + $0x14] sm:$0xf]
        %v635 = vld [vmem:[%s628 + $0x18] sm:$0xf]
        %v636 = vld [vmem:[%s628 + $0x1c] sm:$0xf]
        %v637 = vld [vmem:[%s628 + $0x20] sm:$0xf]
        %v638 = vld [vmem:[%s628 + $0x24] sm:$0xf]
        %v639 = vld [vmem:[%s628 + $0x28] sm:$0xf]
        %v640 = vld [vmem:[%s628 + $0x2c] sm:$0xf]
        %v641 = vld [vmem:[%s628 + $0x30] sm:$0xf]
        %v642 = vld [vmem:[%s628 + $0x34] sm:$0xf]
        %v643 = vld [vmem:[%s628 + $0x38] sm:$0xf]
        %v644 = vld [vmem:[%s628 + $0x3c] sm:$0xf]
        %v661 = vunpack.c.l.b16 %v629
        %v662 = vunpack.c.l.b16 %v630
        %v663 = vunpack.c.l.b16 %v631
        %v664 = vunpack.c.l.b16 %v632
        %v665 = vunpack.c.l.b16 %v633
        %v666 = vunpack.c.l.b16 %v634
        %v667 = vunpack.c.l.b16 %v635
        %v668 = vunpack.c.l.b16 %v636
        %v669 = vunpack.c.l.b16 %v637
        %v670 = vunpack.c.l.b16 %v638
        %v671 = vunpack.c.l.b16 %v639
        %v672 = vunpack.c.l.b16 %v640
        %v673 = vunpack.c.l.b16 %v641
        %v674 = vunpack.c.l.b16 %v642
        %v675 = vunpack.c.l.b16 %v643
        %v676 = vunpack.c.l.b16 %v644
        %v677 = vpack.c.b16 %v662, %v661
        %v678 = vpack.c.b16 %v664, %v663
        %v679 = vpack.c.b16 %v666, %v665
        %v680 = vpack.c.b16 %v668, %v667
        %v681 = vpack.c.b16 %v670, %v669
        %v682 = vpack.c.b16 %v672, %v671
        %v683 = vpack.c.b16 %v674, %v673
        %v684 = vpack.c.b16 %v676, %v675
        %693 = vmatprep.subr.bf16.mxu0 0
        %694 = vmatpush1.bf16.msra.mxu0 %v677
        %695 = vmatprep.subr.bf16.mxu0 0
        %696 = vmatpush1.bf16.msra.mxu0 %v678
        %697 = vmatprep.subr.bf16.mxu0 0
        %698 = vmatpush1.bf16.msra.mxu0 %v679
        %699 = vmatprep.subr.bf16.mxu0 0
        %700 = vmatpush1.bf16.msra.mxu0 %v680
        %701 = vmatprep.subr.bf16.mxu0 0
        %702 = vmatpush1.bf16.msra.mxu0 %v681
        %703 = vmatprep.subr.bf16.mxu0 0
        %704 = vmatpush1.bf16.msra.mxu0 %v682
        %705 = vmatprep.subr.bf16.mxu0 0
        %706 = vmatpush1.bf16.msra.mxu0 %v683
        %707 = vmatprep.subr.bf16.mxu0 0
        %708 = vmatpush1.bf16.msra.mxu0 %v684
        %709 = vmatprep.subr.bf16.mxu0 0
        %710 = vmatpush1.bf16.msra.mxu0 0
        %711 = vmatprep.subr.bf16.mxu0 0
        %712 = vmatpush1.bf16.msra.mxu0 0
        %713 = vmatprep.subr.bf16.mxu0 0
        %714 = vmatpush1.bf16.msra.mxu0 0
        %715 = vmatprep.subr.bf16.mxu0 0
        %716 = vmatpush1.bf16.msra.mxu0 0
        %717 = vmatprep.subr.bf16.mxu0 0
        %718 = vmatpush1.bf16.msra.mxu0 0
        %719 = vmatprep.subr.bf16.mxu0 0
        %720 = vmatpush1.bf16.msra.mxu0 0
        %721 = vmatprep.subr.bf16.mxu0 0
        %722 = vmatpush1.bf16.msra.mxu0 0
        %723 = vmatprep.subr.bf16.mxu0 0
        %724 = vmatpush1.bf16.msra.mxu0 0
        %725 = vmatprep.mubr.bf16.mxu0 0
        %726 = vmatmul.mubr.bf16.gmra.mrb[0].mxu0 %v627
        %v727 = vpop.f32.mrb[0].mxu0
        %v728 = vadd.f32 0.0, %v727
        %v729 = vpop.f32.mrb[0].mxu0
        %v730 = vpop.f32.mrb[0].mxu0
        %v731 = vpop.f32.mrb[0].mxu0
        %732 = vdwg.mxu0
        %v733 = vadd.f32 %v622, %v728
        %v734 = vld [vmem:[%s5] sm:$0x1]
        %v736 = vlaneseq
        %v737 = vshrl.u32 %v736, 7
        %v738 = vsub.s32 0, %v737
        %v739 = vrot.slane %v734, %v738
        %v741 = vadd.f32 %v733, %v739
        %v742 = vpack.c.bf16 %v741, %v741
        %743 = vst [vmem:[%s375] sm:$0xf] %v742
        %v744 = vrot.slane %v741, 4
        %v745 = vadd.f32 %v741, %v744
        %v746 = vrot.slane %v745, 2
        %v747 = vadd.f32 %v745, %v746
        %v748 = vrot.slane %v747, 1
        %v749 = vadd.f32 %v747, %v748
        %750 = vst [vmem:[%s381] sm:$0x1] %v749
        %v751 = vmul.f32 %v741, %v741
        %v752 = vrot.slane %v751, 4
        %v753 = vadd.f32 %v751, %v752
        %v754 = vrot.slane %v753, 2
        %v755 = vadd.f32 %v753, %v754
        %v756 = vrot.slane %v755, 1
        %v757 = vadd.f32 %v755, %v756
        %758 = vst [vmem:[%s387] sm:$0x1] %v757
        %s759 = sand.u32 %s176, 1
        %s760 = scalar_lea.sflag [#allocation4], %s759
        %s761 = sand.u32 %s176, 1
        %s762 = smul.addr %s761, 4
        %s763 = scalar_lea.vmem [#allocation8], %s762
        %s764 = sand.u32 %s32, 1
        %s765 = scalar_lea.sflag [#allocation10], %s764
        %s766 = sand.u32 %s202, 1
        %s767 = scalar_lea.vmem [#allocation9], %s766
        %s768 = sand.u32 %s32, 1
        %s769 = scalar_lea.sflag [#allocation10], %s768
        %s770 = sand.u32 %s228, 1
        %s771 = scalar_lea.vmem [#allocation11], %s770
        // Predicated region
        $region57: #{tpu_custom_call.1} parent=43 // pred_check
          %p772 = pneg %p186
        $region58: #{tpu_custom_call.1} parent=43 // pred_check_branch
          %774 = sbr.rel (%p772) target = $region60
        $region59: #{tpu_custom_call.1} parent=43 // pred_region
          %s776 = ssub.s32 64, 64
          %777 = vsyncadd %s760, %s776
          %s778 = smul.addr %s32, 64
          %s779 = scalar_lea.hbm %s6, %s778
          %s781 = sshll.u32 %s763, 4
          %s782 = int_to_ptr.vmem [resolvable:$true] %s781
          %784 = dma.vmem_to_hbm [thread:$0]  %s782, 64, %s779, %s760
        $region60: #{tpu_custom_call.1} parent=43 // pred_fallthru
          _
        // Predicated region
        $region61: #{tpu_custom_call.1} parent=43 // pred_check
          %p785 = pneg %p212
        $region62: #{tpu_custom_call.1} parent=43 // pred_check_branch
          %787 = sbr.rel (%p785) target = $region64
        $region63: #{tpu_custom_call.1} parent=43 // pred_region
          %s789 = ssub.s32 16, 16
          %790 = vsyncadd %s765, %s789
          %s791 = smul.addr %s32, 16
          %s792 = scalar_lea.hbm %s7, %s791
          %s794 = sshll.u32 %s767, 4
          %s795 = int_to_ptr.vmem [resolvable:$true] %s794
          %797 = dma.vmem_to_hbm [thread:$0]  %s795, 16, %s792, %s765
        $region64: #{tpu_custom_call.1} parent=43 // pred_fallthru
          _
        // Predicated region
        $region65: #{tpu_custom_call.1} parent=43 // pred_check
          %p798 = pneg %p238
        $region66: #{tpu_custom_call.1} parent=43 // pred_check_branch
          %800 = sbr.rel (%p798) target = $region68
        $region67: #{tpu_custom_call.1} parent=43 // pred_region
          %s802 = ssub.s32 16, 16
          %803 = vsyncadd %s769, %s802
          %s804 = smul.addr %s32, 16
          %s805 = scalar_lea.hbm %s8, %s804
          %s807 = sshll.u32 %s771, 4
          %s808 = int_to_ptr.vmem [resolvable:$true] %s807
          %810 = dma.vmem_to_hbm [thread:$0]  %s808, 16, %s805, %s769
        $region68: #{tpu_custom_call.1} parent=43 // pred_fallthru
          _
      $region44: #{tpu_custom_call.1} parent=5 // pred_fallthru
        _
      %p811 = scmp.le.s32.totalorder 2, %s27
      // Predicated region
      $region69: #{tpu_custom_call.1} parent=5 // pred_check
        %p812 = pneg %p811
      $region70: #{tpu_custom_call.1} parent=5 // pred_check_branch
        %814 = sbr.rel (%p812) target = $region72
      $region71: #{tpu_custom_call.1} parent=5 // pred_region
        %s815 = ssub.s32 %s27, 2
        // Predicated region
        $region73: #{tpu_custom_call.1} parent=71 // pred_check
          %p816 = pneg %p192
        $region74: #{tpu_custom_call.1} parent=71 // pred_check_branch
          %818 = sbr.rel (%p816) target = $region76
        $region75: #{tpu_custom_call.1} parent=71 // pred_region
          %s819 = sand.u32 %s177, 1
          %s820 = scalar_lea.sflag [#allocation4], %s819
          %s821 = sand.u32 %s177, 1
          %s822 = smul.addr %s821, 4
          %s823 = scalar_lea.vmem [#allocation8], %s822
          %824 = dma.done %s820, 64
        $region76: #{tpu_custom_call.1} parent=71 // pred_fallthru
          _
        // Predicated region
        $region77: #{tpu_custom_call.1} parent=71 // pred_check
          %p825 = pneg %p218
        $region78: #{tpu_custom_call.1} parent=71 // pred_check_branch
          %827 = sbr.rel (%p825) target = $region80
        $region79: #{tpu_custom_call.1} parent=71 // pred_region
          %s828 = sand.u32 %s33, 1
          %s829 = scalar_lea.sflag [#allocation10], %s828
          %s830 = sand.u32 %s203, 1
          %s831 = scalar_lea.vmem [#allocation9], %s830
          %832 = dma.done %s829, 16
        $region80: #{tpu_custom_call.1} parent=71 // pred_fallthru
          _
        // Predicated region
        $region81: #{tpu_custom_call.1} parent=71 // pred_check
          %p833 = pneg %p244
        $region82: #{tpu_custom_call.1} parent=71 // pred_check_branch
          %835 = sbr.rel (%p833) target = $region84
        $region83: #{tpu_custom_call.1} parent=71 // pred_region
          %s836 = sand.u32 %s33, 1
          %s837 = scalar_lea.sflag [#allocation10], %s836
          %s838 = sand.u32 %s229, 1
          %s839 = scalar_lea.vmem [#allocation11], %s838
          %840 = dma.done %s837, 16
        $region84: #{tpu_custom_call.1} parent=71 // pred_fallthru
          _
      $region72: #{tpu_custom_call.1} parent=5 // pred_fallthru
        _
    $region6: #{tpu_custom_call.1} parent=1 // loop_footer
      %s31 = sadd.s32 1, %s27
    $region7: #{tpu_custom_call.1} parent=1 // loop_footer_branch
      %26 = sbr.rel target = $region3
    $region8: #{tpu_custom_call.1} parent=1 // loop_exit
      _
    %841 = vsyncpa [#allocation3], 1
    %s842 = scalar_lea.sflag [#allocation3], 1
    %843 = vsyncpa %s842, 1
    %844 = vsyncpa [#allocation6], 1
    %s845 = scalar_lea.sflag [#allocation6], 1
    %846 = vsyncpa %s845, 1
    %847 = vsyncpa [#allocation4], 1
    %s848 = scalar_lea.sflag [#allocation4], 1
    %849 = vsyncpa %s848, 1
    %850 = vsyncpa [#allocation10], 1
    %s851 = scalar_lea.sflag [#allocation10], 1
    %852 = vsyncpa %s851, 1

</llo_original>
